<compile_context>
chip_gen: v7x
topology: tpu7x:2x2x1
jax: 0.10.0
libtpu: 0.0.40
codegen_flags: <defaults>
</compile_context>

<pallas_src>
import functools

import jax
import jax.numpy as jnp
from jax import lax
from jax.experimental import pallas as pl
from jax.experimental.pallas import tpu as pltpu


# ---------------------------------------------------------------------------
# Small helpers
# ---------------------------------------------------------------------------
def _round_up(x: int, m: int) -> int:
    return (x + m - 1) // m * m


def _vmem_capacity_bytes() -> int:
    """Physical VMEM of the current chip; conservative fallback = 64 MiB (v7x)."""
    try:
        cap = int(getattr(pltpu.get_tpu_info(), "vmem_capacity_bytes", 0))
        if cap > 0:
            return cap
    except Exception:
        pass
    return 64 << 20


def _is_v5() -> bool:
    try:
        return "v5" in jax.devices()[0].device_kind.lower()
    except Exception:
        return False


def _pick_tile(n_tokens: int, max_tile: int) -> tuple[int, int]:
    """Largest multiple-of-8 tile <= max_tile that divides round_up(n, 8)."""
    n8 = _round_up(max(n_tokens, 1), 8)
    t = min(max_tile, n8)
    t -= t % 8
    while t >= 8:
        if n8 % t == 0:
            return t, n8
        t -= 8
    return 8, n8


# ---------------------------------------------------------------------------
# Path 1: VMEM-resident table, V-chunked one-hot MXU gather (small vocab).
# ---------------------------------------------------------------------------
def _make_resident_kernel(vc: int, n_chunks: int):
    def kernel(ids_ref, emb_ref, out_ref):
        # ids_ref: (T, 1) int32 tile of token ids (VMEM)
        # emb_ref: (V_pad, D) embedding table, resident in VMEM
        # out_ref: (T, D) dense output tile
        idx = ids_ref[...]                                       # (T, 1)
        t = idx.shape[0]
        d = emb_ref.shape[1]
        # (1, Vc) iota, broadcast against (T, 1) ids in the compare -> (T, Vc)
        col = lax.broadcasted_iota(jnp.int32, (1, vc), 1)

        def chunk(c, acc):
            onehot = (col + c * vc == idx).astype(emb_ref.dtype)  # (T, Vc)
            if n_chunks == 1:
                blk = emb_ref[...]                                # (Vc=V, D)
            else:
                start = pl.multiple_of(c * vc, 8)
                blk = emb_ref[pl.ds(start, vc), :]                # (Vc, D)
            return acc + jnp.dot(onehot, blk,
                                 preferred_element_type=jnp.float32)

        acc0 = jnp.zeros((t, d), jnp.float32)
        if n_chunks == 1:
            acc = chunk(0, acc0)
        else:
            # fori_loop (not a Python unroll) bounds the live (T, Vc) temp.
            acc = lax.fori_loop(0, n_chunks, chunk, acc0)
        out_ref[...] = acc.astype(out_ref.dtype)

    return kernel


def _host_embedding_resident(flat_ids, emb_table, tile_tokens, n_pad):
    n = flat_ids.shape[0]
    v, d = emb_table.shape
    ids = jnp.pad(flat_ids, (0, n_pad - n)).reshape(n_pad, 1)
    num_tiles = n_pad // tile_tokens

    # Chunk V so the live one-hot temp is (T, Vc); pad V to a Vc multiple.
    vc = min(512, _round_up(v, 8))
    v_pad = _round_up(v, vc)
    if v_pad != v:
        emb_table = jnp.pad(emb_table, ((0, v_pad - v), (0, 0)))
    n_chunks = v_pad // vc

    itemsize = emb_table.dtype.itemsize
    table_bytes = v_pad * d * itemsize
    # Single-buffer a large resident table (constant block index -> zero cost).
    single_buffer = table_bytes > (4 << 20)
    table_bufs = 1 if single_buffer else 2
    table_kwargs = {"pipeline_mode": pl.Buffered(1)} if single_buffer else {}
    table_spec = pl.BlockSpec((v_pad, d), lambda i: (0, 0), **table_kwargs)

    cap = _vmem_capacity_bytes()
    vmem_need = (table_bufs * table_bytes
                 + 2 * tile_tokens * d * itemsize      # double-buffered outputs
                 + 2 * tile_tokens * 4                 # id tiles
                 + tile_tokens * vc * 4                # one-hot chunk temp
                 + 2 * tile_tokens * d * 4)            # f32 accumulator slack
    vmem_limit = int(min(cap * 3 // 4, max(32 << 20, vmem_need + (8 << 20))))

    out = pl.pallas_call(
        _make_resident_kernel(vc, n_chunks),
        out_shape=jax.ShapeDtypeStruct((n_pad, d), emb_table.dtype),
        grid=(num_tiles,),
        in_specs=[
            pl.BlockSpec((tile_tokens, 1), lambda i: (i, 0)),
            table_spec,   # constant index_map -> DMA'd from HBM once, reused
        ],
        out_specs=pl.BlockSpec((tile_tokens, d), lambda i: (i, 0)),
        compiler_params=pltpu.CompilerParams(
            dimension_semantics=("parallel",),
            vmem_limit_bytes=vmem_limit,
        ),
    )(ids, emb_table)
    return out[:n] if n_pad != n else out


# ---------------------------------------------------------------------------
# Path 2: table in HBM, batched per-row DMA gather (large vocab).
# ---------------------------------------------------------------------------
def _dma_gather_kernel(ids_hbm, emb_hbm, out_ref, ids_smem, ids_sem, row_sem):
    # ids_hbm:  (N_pad,) int32 token ids, left in HBM (memory_space=pl.ANY)
    # emb_hbm:  (V, D) embedding table, left in HBM
    # out_ref:  (T, D) pipelined VMEM output block
    # ids_smem: (T,) int32 SMEM scratch for this tile's ids
    # ids_sem:  DMA semaphore for the id slice copy
    # row_sem:  single DMA semaphore shared by all T row gathers
    tile = pl.program_id(0)
    t_sz = out_ref.shape[0]
    base = pl.multiple_of(tile * t_sz, 8)

    # 1) Fetch this tile's ids into SMEM (tiny DMA; keeps SMEM usage constant
    #    regardless of total token count, unlike whole-array scalar prefetch).
    id_cp = pltpu.make_async_copy(ids_hbm.at[pl.ds(base, t_sz)], ids_smem, ids_sem)
    id_cp.start()
    id_cp.wait()

    # 2) Issue all T row gathers back-to-back so they are all in flight at
    #    once.  Unrolled so row t+1's address math overlaps row t's
    #    descriptor push (vector-misc slot is the issue limiter).
    def issue(t, carry):
        row = ids_smem[t]
        pltpu.make_async_copy(emb_hbm.at[row], out_ref.at[t], row_sem).start()
        return carry

    lax.fori_loop(0, t_sz, issue, 0, unroll=8)

    # 3) Single aggregate drain: the DMA semaphore counts bytes, and the T row
    #    copies move exactly out_ref's byte count in total, so one wait sized
    #    by out_ref replaces T per-row waits (hundreds of saved bundles/tile).
    pltpu.make_async_copy(out_ref, out_ref, row_sem).wait()


def _host_embedding_dma(flat_ids, emb_table, tile_tokens, n_pad):
    n = flat_ids.shape[0]
    v, d = emb_table.shape
    ids = jnp.pad(flat_ids, (0, n_pad - n))
    num_tiles = n_pad // tile_tokens

    itemsize = emb_table.dtype.itemsize
    cap = _vmem_capacity_bytes()
    vmem_need = 2 * tile_tokens * d * itemsize          # double-buffered outputs
    vmem_limit = int(min(cap * 3 // 4, max(32 << 20, 4 * vmem_need)))

    # TODO(synk): for even more overlap, gather into a (2, T, D) VMEM scratch
    # with per-slot semaphores so tile k+1's gathers start before tile k's
    # drain; kept single-step-self-contained here so the token axis stays
    # megacore-safe ("parallel") without cross-step scratch state.
    out = pl.pallas_call(
        _dma_gather_kernel,
        out_shape=jax.ShapeDtypeStruct((n_pad, d), emb_table.dtype),
        grid=(num_tiles,),
        in_specs=[
            pl.BlockSpec(memory_space=pl.ANY),   # ids stay in HBM
            pl.BlockSpec(memory_space=pl.ANY),   # table stays in HBM
        ],
        out_specs=pl.BlockSpec((tile_tokens, d), lambda i: (i, 0)),
        scratch_shapes=[
            pltpu.SMEM((tile_tokens,), jnp.int32),
            pltpu.SemaphoreType.DMA(()),
            pltpu.SemaphoreType.DMA(()),
        ],
        compiler_params=pltpu.CompilerParams(
            dimension_semantics=("parallel",),
            vmem_limit_bytes=vmem_limit,
        ),
    )(ids, emb_table)
    return out[:n] if n_pad != n else out


# ---------------------------------------------------------------------------
# Public wrapper: torch.nn.Embedding(V, D)(x) forward semantics.
# ---------------------------------------------------------------------------
_SMALL_VOCAB_MAX = 4096          # one-hot MXU gather cutoff (V-chunked kernel)


def host_embedding(token_ids: jax.Array, emb_table: jax.Array, *,
                   tile_tokens: int | None = None,
                   force_dma_gather: bool = False) -> jax.Array:
    """Equivalent of torch.nn.Embedding(V, D)(token_ids): (B, S) -> (B, S, D)."""
    b, s = token_ids.shape
    v, d = emb_table.shape
    n = b * s

    # Clamp so an out-of-range id can never drive an OOB gather/DMA.
    # (torch.nn.Embedding would raise; forward-only lookup semantics kept.)
    flat_ids = jnp.clip(token_ids.reshape(-1).astype(jnp.int32), 0, v - 1)

    # v5e: smaller default token tile (no bf16 VPU, 1 vst slot, narrower MXU).
    max_tile = 128 if _is_v5() else 256
    if tile_tokens is None:
        tile_tokens, n_pad = _pick_tile(n, max_tile)
    else:
        tile_tokens = max(8, _round_up(tile_tokens, 8))
        n_pad = _round_up(n, tile_tokens)

    cap = _vmem_capacity_bytes()
    resident_bytes_max = min(16 << 20, cap // 6)        # ~10.7 MiB on v7x
    table_bytes = _round_up(v, 8) * d * emb_table.dtype.itemsize
    use_resident = (not force_dma_gather
                    and v <= _SMALL_VOCAB_MAX
                    and table_bytes <= resident_bytes_max)

    if use_resident:
        out = _host_embedding_resident(flat_ids, emb_table, tile_tokens, n_pad)
    else:
        out = _host_embedding_dma(flat_ids, emb_table, tile_tokens, n_pad)
    return out.reshape(b, s, d)


if __name__ == "__main__":
    # Small, deterministic setup consistent with HostEmbedding:
    #   model_args.vocab_size = 64, model_args.dim = 128
    vocab_size = 64
    dim = 128
    batch = 2
    seq = 8

    key = jax.random.PRNGKey(0)
    k_emb, k_ids = jax.random.split(key)

    # torch.nn.Embedding default init: weight ~ N(0, 1)
    emb_table = jax.random.normal(k_emb, (vocab_size, dim), dtype=jnp.float32)
    token_ids = jax.random.randint(k_ids, (batch, seq), 0, vocab_size,
                                   dtype=jnp.int32)

    ref = jnp.take(emb_table, token_ids, axis=0)

    # Path 1 (auto-selected for this small vocab): VMEM-resident table +
    # V-chunked one-hot MXU gather, dense (T, D) output tiles.
    out = jax.block_until_ready(host_embedding(token_ids, emb_table))
    assert out.shape == (batch, seq, dim), out.shape
    assert out.dtype == emb_table.dtype, out.dtype
    assert bool(jnp.allclose(out, ref)), "resident-table path mismatch"

    # Path 2 (forced): large-vocab batched DMA-gather path, same semantics.
    out_dma = jax.block_until_ready(
        host_embedding(token_ids, emb_table, force_dma_gather=True)
    )
    assert bool(jnp.allclose(out_dma, ref)), "dma-gather path mismatch"

    print("KERNEL_OK")
</pallas_src>

<mosaic_0001>
module attributes {stable_mosaic.version = 11 : i64} {
  func.func @kernel(%arg0: i32, %arg1: memref<16x1xi32, #tpu.memory_space<vmem>>, %arg2: memref<64x128xf32, #tpu.memory_space<vmem>>, %arg3: memref<16x128xf32, #tpu.memory_space<vmem>>) attributes {dimension_semantics = [#tpu.dimension_semantics<parallel>], iteration_bounds = array<i64: 1>, scalar_prefetch = 0 : i64, scratch_operands = 0 : i64, tpu.core_type = #tpu.core_type<tc>, window_params = [{transform_indices = @transform_0, window_bounds = array<i64: 16, 1>}, {pipeline_mode = #tpu.pipeline_mode<synchronous>, transform_indices = @transform_1, window_bounds = array<i64: 64, 128>}, {transform_indices = @transform_2, window_bounds = array<i64: 16, 128>}]} {
    %c0 = arith.constant 0 : index
    %c0_0 = arith.constant 0 : index
    %0 = vector.load %arg1[%c0, %c0_0] : memref<16x1xi32, #tpu.memory_space<vmem>>, vector<16x1xi32>
    %1 = tpu.iota {dimensions = array<i32: 1>} : vector<1x64xi32>
    %cst = arith.constant 0.000000e+00 : f32
    %2 = vector.broadcast %cst : f32 to vector<16x128xf32>
    %c0_i32 = arith.constant 0 : i32
    %3 = vector.broadcast %c0_i32 : i32 to vector<1x64xi32>
    %4 = arith.addi %1, %3 : vector<1x64xi32>
    %5 = vector.broadcast %4 : vector<1x64xi32> to vector<16x64xi32>
    %6 = vector.broadcast %0 : vector<16x1xi32> to vector<16x64xi32>
    %7 = arith.cmpi eq, %5, %6 : vector<16x64xi32>
    %8 = arith.extui %7 : vector<16x64xi1> to vector<16x64xi32>
    %9 = arith.sitofp %8 : vector<16x64xi32> to vector<16x64xf32>
    %c0_1 = arith.constant 0 : index
    %c0_2 = arith.constant 0 : index
    %10 = vector.load %arg2[%c0_1, %c0_2] : memref<64x128xf32, #tpu.memory_space<vmem>>, vector<64x128xf32>
    %cst_3 = arith.constant dense<0.000000e+00> : vector<16x128xf32>
    %11 = tpu.matmul %9, %10, %cst_3 {dimension_numbers = #tpu.dot_dimension_numbers<[1], [0], [0], [1], [0, 0, 1, 1], [], []>} : vector<16x64xf32>, vector<64x128xf32>, vector<16x128xf32> -> vector<16x128xf32>
    %12 = arith.addf %2, %11 : vector<16x128xf32>
    %c0_4 = arith.constant 0 : index
    %c0_5 = arith.constant 0 : index
    %13 = vector.load %arg3[%c0_4, %c0_5] : memref<16x128xf32, #tpu.memory_space<vmem>>, vector<16x128xf32>
    tpu.vector_store %arg3[%c0_4, %c0_5], %12 {strides = array<i32>} : memref<16x128xf32, #tpu.memory_space<vmem>>, vector<16x128xf32>,
    return
  }
  func.func @transform_0(%arg0: i32) -> (i32, i32) {
    %c0_i32 = arith.constant 0 : i32
    %c0_i32_0 = arith.constant 0 : i32
    return %arg0, %c0_i32 : i32, i32
  }
  func.func @transform_1(%arg0: i32) -> (i32, i32) {
    %c0_i32 = arith.constant 0 : i32
    %c0_i32_0 = arith.constant 0 : i32
    %c0_i32_1 = arith.constant 0 : i32
    return %c0_i32, %c0_i32_0 : i32, i32
  }
  func.func @transform_2(%arg0: i32) -> (i32, i32) {
    %c0_i32 = arith.constant 0 : i32
    %c0_i32_0 = arith.constant 0 : i32
    return %arg0, %c0_i32 : i32, i32
  }
}

</mosaic_0001>

<llo_original>
// kernel: tpu_custom_call.1
$region0: #{tpu_custom_call.1}
  #allocation0 [shape = 'u32[]', space=smem, size = 0x4, offset = 0x4, fixed_abs, tag = 'smem constant byte address 0x4 - core index']
  #allocation1 [shape = 'u32[144,128]{1,0:T(1,128)}', space=vmem, size = 0x12000, scoped, tag = 'internal scratch']
  %s0 = inlined_call_operand.vmem [shape: s32[16,1], index: 0, kind: input, shape index: {}]
  %s1 = inlined_call_operand.hbm [shape: f32[64,128], index: 1, kind: input, shape index: {}]
  %s2 = inlined_call_operand.hbm [shape: f32[16,128], index: 2, kind: output, shape index: {}]
  %s3 = sld [smem:[#allocation0]]
  $region22: #{tpu_custom_call.1} parent=0
    _
  %s5 = ssub.s32 1, %s3
  %s6 = scalar_select 0, %s5, %s3
  $region1: #{tpu_custom_call.1} parent=0
    #allocation2 [shape = 'u8[32768]{0}', space=vmem, size = 0x8000, scoped, tag = 'input window, operand 1, single buffered']
    #allocation3 [shape = 's32[1]{0}', space=sflag, size = 0x4, scoped, tag = 'scoped memory for tpu_custom_call.1']
    #allocation4 [shape = 's32[1]{0}', space=sflag, size = 0x4, scoped, tag = 'scoped memory for tpu_custom_call.1']
    #allocation5 [shape = 'u8[8192]{0}', space=vmem, size = 0x2000, scoped, tag = 'output window, operand 0, single buffered']
    %7 = vsyncpa [#allocation3], 0
    %8 = vsyncpa [#allocation4], 0
    // Predicated region
    $region2: #{tpu_custom_call.1} parent=1 // pred_check
      _
    $region3: #{tpu_custom_call.1} parent=1 // pred_check_branch
      %10 = sbr.rel (0) target = $region5
    $region4: #{tpu_custom_call.1} parent=1 // pred_region
      _
    $region5: #{tpu_custom_call.1} parent=1 // pred_fallthru
      _
    // Predicated region
    $region6: #{tpu_custom_call.1} parent=1 // pred_check
      _
    $region7: #{tpu_custom_call.1} parent=1 // pred_check_branch
      %12 = sbr.rel (0) target = $region9
    $region8: #{tpu_custom_call.1} parent=1 // pred_region
      %s14 = ssub.s32 1024, 1024
      %15 = vsyncadd [#allocation3], %s14
      %s16 = sshll.u32 [#allocation2], 4
      %s17 = int_to_ptr.vmem [resolvable:$true] %s16
      %22 = dma.hbm_to_vmem [thread:$0]  %s1, 1024, %s17, [#allocation3], 128, 128, 8
    $region9: #{tpu_custom_call.1} parent=1 // pred_fallthru
      _
    // Predicated region
    $region10: #{tpu_custom_call.1} parent=1 // pred_check
      _
    $region11: #{tpu_custom_call.1} parent=1 // pred_check_branch
      %24 = sbr.rel (0) target = $region13
    $region12: #{tpu_custom_call.1} parent=1 // pred_region
      %25 = dma.done [#allocation3], 1024
    $region13: #{tpu_custom_call.1} parent=1 // pred_fallthru
      _
    %v26 = vld [vmem:[%s0] sm:$0xff]
    %v27 = vld [vmem:[%s0 + $0x8] sm:$0xff]
    %v28 = vlaneseq
    %v29 = vand.u32 %v28, 127
    %30 = vset.pattern.permute.xlu0 0
    %31 = vperm.xlu0 %30, %v26
    %v32 = vpop.permute.xlu0 %31
    %33 = vset.pattern.permute.xlu0 0
    %34 = vperm.xlu0 %33, %v27
    %v35 = vpop.permute.xlu0 %34
    %vm36 = vcmp.eq.s32.totalorder %v29, %v32
    %vm37 = vcmp.eq.s32.totalorder %v29, %v35
    %v38 = vsel %vm36, 1, 0
    %v39 = vsel %vm37, 1, 0
    %v40 = vcvt.s32.f32 %v38
    %v41 = vcvt.s32.f32 %v39
    %v42 = vld [vmem:[#allocation2] sm:$0xff]
    %v43 = vld [vmem:[#allocation2 + $0x8] sm:$0xff]
    %v44 = vld [vmem:[#allocation2 + $0x10] sm:$0xff]
    %v45 = vld [vmem:[#allocation2 + $0x18] sm:$0xff]
    %v46 = vld [vmem:[#allocation2 + $0x20] sm:$0xff]
    %v47 = vld [vmem:[#allocation2 + $0x28] sm:$0xff]
    %v48 = vld [vmem:[#allocation2 + $0x30] sm:$0xff]
    %v49 = vld [vmem:[#allocation2 + $0x38] sm:$0xff]
    %vm50 = vcmask 523264
    %v52 = vsel %vm50, %v40, 0
    %v55 = vsel %vm50, %v41, 0
    %57 = vmatprep.subr.mxu0 0.0
    %58 = vmatpush1.msra.mxu0 %v42
    %59 = vmatprep.subr.mxu0 0.0
    %60 = vmatpush1.msra.mxu0 %v43
    %61 = vmatprep.subr.mxu0 0.0
    %62 = vmatpush1.msra.mxu0 %v44
    %63 = vmatprep.subr.mxu0 0.0
    %64 = vmatpush1.msra.mxu0 %v45
    %65 = vmatprep.subr.mxu0 0.0
    %66 = vmatpush1.msra.mxu0 %v46
    %67 = vmatprep.subr.mxu0 0.0
    %68 = vmatpush1.msra.mxu0 %v47
    %69 = vmatprep.subr.mxu0 0.0
    %70 = vmatpush1.msra.mxu0 %v48
    %71 = vmatprep.subr.mxu0 0.0
    %72 = vmatpush1.msra.mxu0 %v49
    %73 = vmatprep.subr.mxu0 0.0
    %74 = vmatpush1.msra.mxu0 0.0
    %75 = vmatprep.subr.mxu0 0.0
    %76 = vmatpush1.msra.mxu0 0.0
    %77 = vmatprep.subr.mxu0 0.0
    %78 = vmatpush1.msra.mxu0 0.0
    %79 = vmatprep.subr.mxu0 0.0
    %80 = vmatpush1.msra.mxu0 0.0
    %81 = vmatprep.subr.mxu0 0.0
    %82 = vmatpush1.msra.mxu0 0.0
    %83 = vmatprep.subr.mxu0 0.0
    %84 = vmatpush1.msra.mxu0 0.0
    %85 = vmatprep.subr.mxu0 0.0
    %86 = vmatpush1.msra.mxu0 0.0
    %87 = vmatprep.subr.mxu0 0.0
    %88 = vmatpush1.msra.mxu0 0.0
    %89 = vmatprep.subr.mxu0 0.0
    %90 = vmatpush1.msra.mxu0 0.0
    %91 = vmatprep.subr.mxu0 0.0
    %92 = vmatpush1.msra.mxu0 0.0
    %93 = vmatprep.subr.mxu0 0.0
    %94 = vmatpush1.msra.mxu0 0.0
    %95 = vmatprep.subr.mxu0 0.0
    %96 = vmatpush1.msra.mxu0 0.0
    %97 = vmatprep.subr.mxu0 0.0
    %98 = vmatpush1.msra.mxu0 0.0
    %99 = vmatprep.subr.mxu0 0.0
    %100 = vmatpush1.msra.mxu0 0.0
    %101 = vmatprep.subr.mxu0 0.0
    %102 = vmatpush1.msra.mxu0 0.0
    %103 = vmatprep.subr.mxu0 0.0
    %104 = vmatpush1.msra.mxu0 0.0
    %105 = vmatprep.subr.mxu0 0.0
    %106 = vmatpush1.msra.mxu0 0.0
    %107 = vmatprep.subr.mxu0 0.0
    %108 = vmatpush1.msra.mxu0 0.0
    %109 = vmatprep.subr.mxu0 0.0
    %110 = vmatpush1.msra.mxu0 0.0
    %111 = vmatprep.subr.mxu0 0.0
    %112 = vmatpush1.msra.mxu0 0.0
    %113 = vmatprep.subr.mxu0 0.0
    %114 = vmatpush1.msra.mxu0 0.0
    %115 = vmatprep.subr.mxu0 0.0
    %116 = vmatpush1.msra.mxu0 0.0
    %117 = vmatprep.subr.mxu0 0.0
    %118 = vmatpush1.msra.mxu0 0.0
    %119 = vmatprep.subr.mxu0 0.0
    %120 = vmatpush1.msra.mxu0 0.0
    %121 = vmatprep.mubr.f32.mxu0 0.0
    %122 = vmatmul.mubr.f32.gmra.mrb[0].mxu0 %v52
    %v123 = vpop.f32.mrb[0].mxu0
    %v124 = vadd.f32 0.0, %v123
    %v125 = vpop.f32.mrb[0].mxu0
    %126 = vmatprep.mubr.f32.mxu0 0.0
    %127 = vmatmul.mubr.f32.gmra.mrb[0].mxu0 %v55
    %v128 = vpop.f32.mrb[0].mxu0
    %v129 = vadd.f32 0.0, %v128
    %v130 = vpop.f32.mrb[0].mxu0
    %131 = vdwg.mxu0
    %132 = vst [vmem:[#allocation5] sm:$0xff] %v124
    %133 = vst [vmem:[#allocation5 + $0x8] sm:$0xff] %v129
    // Predicated region
    $region14: #{tpu_custom_call.1} parent=1 // pred_check
      _
    $region15: #{tpu_custom_call.1} parent=1 // pred_check_branch
      %135 = sbr.rel (0) target = $region17
    $region16: #{tpu_custom_call.1} parent=1 // pred_region
      %s137 = ssub.s32 256, 256
      %138 = vsyncadd [#allocation4], %s137
      %s139 = sshll.u32 [#allocation5], 4
      %s140 = int_to_ptr.vmem [resolvable:$true] %s139
      %145 = dma.vmem_to_hbm [thread:$0]  %s140, 256, %s2, [#allocation4], 128, 128, 8
    $region17: #{tpu_custom_call.1} parent=1 // pred_fallthru
      _
    // Predicated region
    $region18: #{tpu_custom_call.1} parent=1 // pred_check
      _
    $region19: #{tpu_custom_call.1} parent=1 // pred_check_branch
      %147 = sbr.rel (0) target = $region21
    $region20: #{tpu_custom_call.1} parent=1 // pred_region
      %148 = dma.done [#allocation4], 256
    $region21: #{tpu_custom_call.1} parent=1 // pred_fallthru
      _
    %149 = vsyncpa [#allocation3], 1
    %150 = vsyncpa [#allocation4], 1

</llo_original>
